<compile_context>
chip_gen: v5e
topology: v5e:2x2
jax: 0.10.0
libtpu: 0.0.40
codegen_flags: <defaults>
</compile_context>

<pallas_src>
import functools

import jax
import jax.numpy as jnp
from jax.experimental import pallas as pl
from jax.experimental.pallas import tpu as pltpu


def _denormalize_kernel(x_ref, o_ref, *, scale, offset):
    # Pure elementwise affine on the VPU; compute in f32, cast on store.
    x = x_ref[...].astype(jnp.float32)
    o_ref[...] = (x * scale + offset).astype(o_ref.dtype)


def denormalize(x, val_min, val_max):
    """Pallas equivalent of Denormalize(val_min, val_max)(x)."""
    # TODO(synk): if val_min/val_max ever become traced (dynamic) values,
    # pass them as SMEM scalars instead of baking them into the kernel.
    scale = float(val_max - val_min) / 2.0
    offset = float(val_max + val_min) / 2.0

    orig_shape = x.shape
    orig_dtype = x.dtype
    n = x.size

    # Pick the widest lane-dense last dim that divides n exactly (no pad).
    lanes = 128
    for cand in (1024, 512, 256, 128):
        if n % cand == 0:
            lanes = cand
            break
    needs_pad = (n % lanes) != 0  # only hit when n is not a multiple of 128

    x_flat = jnp.ravel(x)
    if needs_pad:
        padded_n = pl.cdiv(n, lanes) * lanes
        x_flat = jnp.pad(x_flat, (0, padded_n - n))
    else:
        padded_n = n

    rows = padded_n // lanes
    x2d = x_flat.reshape(rows, lanes)

    # ~2 MiB (f32) per buffer -> 2x(in)+2x(out) double-buffered stays <= ~8 MiB,
    # safe on v5e (16 MiB scoped), v6e (32 MiB) and v7x (32 MiB scoped / 64 MiB).
    target_elems = 512 * 1024
    tm = max(8, min(((target_elems // lanes) // 8) * 8, 4096))
    if rows <= tm:
        tm = rows  # full-extent block along rows (allowed even if not %8)
    grid = (pl.cdiv(rows, tm),)

    kernel = functools.partial(_denormalize_kernel, scale=scale, offset=offset)

    out2d = pl.pallas_call(
        kernel,
        out_shape=jax.ShapeDtypeStruct((rows, lanes), orig_dtype),
        grid_spec=pltpu.PrefetchScalarGridSpec(
            num_scalar_prefetch=0,
            grid=grid,
            in_specs=[pl.BlockSpec((tm, lanes), lambda i: (i, 0))],
            out_specs=pl.BlockSpec((tm, lanes), lambda i: (i, 0)),
        ),
        compiler_params=pltpu.CompilerParams(
            dimension_semantics=("parallel",),
        ),
    )(x2d)

    out_flat = out2d.reshape(-1)
    if needs_pad:
        out_flat = out_flat[:n]
    return out_flat.reshape(orig_shape)


if __name__ == "__main__":
    # Deterministic constructor args (the module's "parameters").
    val_min = -1.0
    val_max = 3.0

    key = jax.random.PRNGKey(0)
    x = jax.random.normal(key, (2, 4, 16, 16), dtype=jnp.float32)  # NCHW

    y = denormalize(x, val_min, val_max)
    y = jax.block_until_ready(y)

    # Reference check in plain JAX.
    y_ref = (val_max - val_min) / 2.0 * x + (val_max + val_min) / 2.0
    assert y.shape == x.shape
    assert y.dtype == x.dtype
    assert jnp.allclose(y, y_ref, atol=1e-6), "mismatch vs reference"

    print("KERNEL_OK")
</pallas_src>

<mosaic_0001>
module attributes {stable_mosaic.version = 11 : i64} {
  func.func @_denormalize_kernel(%arg0: i32, %arg1: memref<2x1024xf32, #tpu.memory_space<vmem>>, %arg2: memref<2x1024xf32, #tpu.memory_space<vmem>>) attributes {dimension_semantics = [#tpu.dimension_semantics<parallel>], iteration_bounds = array<i64: 1>, scalar_prefetch = 0 : i64, scratch_operands = 0 : i64, tpu.core_type = #tpu.core_type<tc>, window_params = [{transform_indices = @transform_0, window_bounds = array<i64: 2, 1024>}, {transform_indices = @transform_1, window_bounds = array<i64: 2, 1024>}]} {
    %c0 = arith.constant 0 : index
    %c0_0 = arith.constant 0 : index
    %0 = vector.load %arg1[%c0, %c0_0] : memref<2x1024xf32, #tpu.memory_space<vmem>>, vector<2x1024xf32>
    %cst = arith.constant 2.000000e+00 : f32
    %1 = vector.broadcast %cst : f32 to vector<2x1024xf32>
    %2 = arith.mulf %0, %1 : vector<2x1024xf32>
    %cst_1 = arith.constant 1.000000e+00 : f32
    %3 = vector.broadcast %cst_1 : f32 to vector<2x1024xf32>
    %4 = arith.addf %2, %3 : vector<2x1024xf32>
    %c0_2 = arith.constant 0 : index
    %c0_3 = arith.constant 0 : index
    %5 = vector.load %arg2[%c0_2, %c0_3] : memref<2x1024xf32, #tpu.memory_space<vmem>>, vector<2x1024xf32>
    tpu.vector_store %arg2[%c0_2, %c0_3], %4 {strides = array<i32>} : memref<2x1024xf32, #tpu.memory_space<vmem>>, vector<2x1024xf32>,
    return
  }
  func.func @transform_0(%arg0: i32) -> (i32, i32) {
    %c0_i32 = arith.constant 0 : i32
    %c0_i32_0 = arith.constant 0 : i32
    return %arg0, %c0_i32 : i32, i32
  }
  func.func @transform_1(%arg0: i32) -> (i32, i32) {
    %c0_i32 = arith.constant 0 : i32
    %c0_i32_0 = arith.constant 0 : i32
    return %arg0, %c0_i32 : i32, i32
  }
}

</mosaic_0001>

<llo_original>
// kernel: tpu_custom_call.1
$region0: #{tpu_custom_call.1}
  #allocation0 [shape = 'u32[]', space=smem, size = 0x4, offset = 0x4, fixed_abs, tag = 'smem constant byte address 0x4 - core index']
  #allocation1 [shape = 'u32[72,128]{1,0:T(1,128)}', space=vmem, size = 0x9000, scoped, tag = 'internal scratch']
  %s0 = inlined_call_operand.hbm [shape: f32[2,1024], index: 0, kind: input, shape index: {}]
  %s1 = inlined_call_operand.hbm [shape: f32[2,1024], index: 1, kind: output, shape index: {}]
  %s2 = sld [smem:[#allocation0]]
  $region18: #{tpu_custom_call.1} parent=0
    _
  %s4 = ssub.s32 1, %s2
  %s5 = scalar_select 0, %s4, %s2
  $region1: #{tpu_custom_call.1} parent=0
    #allocation2 [shape = 'u8[8192]{0}', space=vmem, size = 0x2000, scoped, tag = 'input window, operand 0, single buffered']
    #allocation3 [shape = 's32[1]{0}', space=sflag, size = 0x4, scoped, tag = 'scoped memory for tpu_custom_call.1']
    #allocation4 [shape = 's32[1]{0}', space=sflag, size = 0x4, scoped, tag = 'scoped memory for tpu_custom_call.1']
    #allocation5 [shape = 'u8[8192]{0}', space=vmem, size = 0x2000, scoped, tag = 'output window, operand 0, single buffered']
    %6 = vsyncpa [#allocation3], 0
    %7 = vsyncpa [#allocation4], 0
    // Predicated region
    $region2: #{tpu_custom_call.1} parent=1 // pred_check
      _
    $region3: #{tpu_custom_call.1} parent=1 // pred_check_branch
      %9 = sbr.rel (0) target = $region5
    $region4: #{tpu_custom_call.1} parent=1 // pred_region
      %11 = vsyncadd [#allocation3], 0
      %s13 = sshll.u32 %s0, 4
      %s14 = int_to_ptr.hbm [resolvable:$true] %s13
      %s15 = sshll.u32 [#allocation2], 4
      %s16 = int_to_ptr.vmem [resolvable:$true] %s15
      %18 = dma.hbm_to_vmem [thread:$0]  %s14, 256, %s16, [#allocation3]
    $region5: #{tpu_custom_call.1} parent=1 // pred_fallthru
      _
    // Predicated region
    $region6: #{tpu_custom_call.1} parent=1 // pred_check
      _
    $region7: #{tpu_custom_call.1} parent=1 // pred_check_branch
      %20 = sbr.rel (0) target = $region9
    $region8: #{tpu_custom_call.1} parent=1 // pred_region
      %22 = dma.done [#allocation3], 256
    $region9: #{tpu_custom_call.1} parent=1 // pred_fallthru
      _
    %v23 = vld [vmem:[#allocation2] sm:$0xff]
    %v24 = vld [vmem:[#allocation2 + $0x8] sm:$0xff]
    %v25 = vmul.f32 %v23, 2.0
    %v26 = vmul.f32 %v24, 2.0
    %v27 = vadd.f32 %v25, 1.0
    %v28 = vadd.f32 %v26, 1.0
    %29 = vst [vmem:[#allocation5] sm:$0xff] %v27
    %30 = vst [vmem:[#allocation5 + $0x8] sm:$0xff] %v28
    // Predicated region
    $region10: #{tpu_custom_call.1} parent=1 // pred_check
      _
    $region11: #{tpu_custom_call.1} parent=1 // pred_check_branch
      %32 = sbr.rel (0) target = $region13
    $region12: #{tpu_custom_call.1} parent=1 // pred_region
      %34 = vsyncadd [#allocation4], 0
      %s36 = sshll.u32 [#allocation5], 4
      %s37 = int_to_ptr.vmem [resolvable:$true] %s36
      %s38 = sshll.u32 %s1, 4
      %s39 = int_to_ptr.hbm [resolvable:$true] %s38
      %41 = dma.vmem_to_hbm [thread:$0]  %s37, 256, %s39, [#allocation4]
    $region13: #{tpu_custom_call.1} parent=1 // pred_fallthru
      _
    // Predicated region
    $region14: #{tpu_custom_call.1} parent=1 // pred_check
      _
    $region15: #{tpu_custom_call.1} parent=1 // pred_check_branch
      %43 = sbr.rel (0) target = $region17
    $region16: #{tpu_custom_call.1} parent=1 // pred_region
      %45 = dma.done [#allocation4], 256
    $region17: #{tpu_custom_call.1} parent=1 // pred_fallthru
      _
    %46 = vsyncpa [#allocation3], 1
    %47 = vsyncpa [#allocation4], 1

</llo_original>
